<compile_context>
chip_gen: v7x
topology: tpu7x:2x2x1
jax: 0.10.0
libtpu: 0.0.40
codegen_flags: <defaults>
</compile_context>

<pallas_src>
import functools
import math

import jax
import jax.numpy as jnp
from jax.experimental import pallas as pl
from jax.experimental.pallas import tpu as pltpu


def _round_up(x, m):
    return (x + m - 1) // m * m


# ---------------------------------------------------------------------------
# Generic row-tiled linear:  y = x @ W + b   (MXU-native dtype, f32 accumulate)
# ---------------------------------------------------------------------------
def _linear_kernel(x_ref, w_ref, b_ref, o_ref):
    # Operands stay in their native dtype (bf16 stays bf16 -> single MXU pass);
    # accumulation forced to f32 via preferred_element_type.
    acc = jnp.dot(x_ref[...], w_ref[...], preferred_element_type=jnp.float32)
    acc = acc + b_ref[...].astype(jnp.float32)
    o_ref[...] = acc.astype(o_ref.dtype)


def _pallas_linear(x2d, w, b, *, row_tile=256):
    M, K = x2d.shape
    N = w.shape[1]
    # MXU-friendly row tile (multiple of 8 sublanes, large enough to fill the
    # systolic array); ragged last tile handled by zero-pad + slice.
    rt = min(row_tile, _round_up(M, 8))
    Mp = _round_up(M, rt)
    if Mp != M:
        x2d = jnp.pad(x2d, ((0, Mp - M), (0, 0)))
    grid = (Mp // rt,)

    out = pl.pallas_call(
        _linear_kernel,
        out_shape=jax.ShapeDtypeStruct((Mp, N), x2d.dtype),
        grid_spec=pltpu.PrefetchScalarGridSpec(
            num_scalar_prefetch=0,
            grid=grid,
            in_specs=[
                pl.BlockSpec((rt, K), lambda i: (i, 0)),   # activations (pipelined over rows)
                # Weight / bias block index is constant -> stays resident across steps.
                # (For very large weights one could add pipeline_mode=pl.Buffered(1).)
                pl.BlockSpec((K, N), lambda i: (0, 0)),
                pl.BlockSpec((1, N), lambda i: (0, 0)),
            ],
            out_specs=pl.BlockSpec((rt, N), lambda i: (i, 0)),
        ),
        compiler_params=pltpu.CompilerParams(
            dimension_semantics=("parallel",),             # megacore-shardable row axis
            vmem_limit_bytes=64 * 1024 * 1024,
        ),
    )(x2d, w, b.reshape(1, N))
    return out[:M] if Mp != M else out


# ---------------------------------------------------------------------------
# Per-(batch, head) attention core: softmax(q k^T / sqrt(D) [+ mask]) @ v
# ---------------------------------------------------------------------------
def _attn_math(q, k, v, mask, scale, out_dtype):
    # q, k, v: (S, D) in input dtype; scores/softmax in f32.
    scores = jax.lax.dot_general(
        q, k, (((1,), (1,)), ((), ())),
        preferred_element_type=jnp.float32) * scale
    if mask is not None:
        scores = scores + mask
    m = jnp.max(scores, axis=-1, keepdims=True)
    e = jnp.exp(scores - m)
    denom = jnp.sum(e, axis=-1, keepdims=True)
    probs = e / denom
    # Attention dropout: identity at inference.
    ctx = jnp.dot(probs.astype(v.dtype), v, preferred_element_type=jnp.float32)
    return ctx.astype(out_dtype), probs.astype(out_dtype)


def _attn_kernel(q_ref, k_ref, v_ref, ctx_ref, probs_ref, *, scale):
    ctx, probs = _attn_math(q_ref[0], k_ref[0], v_ref[0], None, scale, ctx_ref.dtype)
    ctx_ref[0] = ctx
    probs_ref[0] = probs


def _attn_kernel_masked(q_ref, k_ref, v_ref, mask_ref, ctx_ref, probs_ref, *, scale):
    mask = mask_ref[0].astype(jnp.float32)
    ctx, probs = _attn_math(q_ref[0], k_ref[0], v_ref[0], mask, scale, ctx_ref.dtype)
    ctx_ref[0] = ctx
    probs_ref[0] = probs


# ---------------------------------------------------------------------------
# Full module forward
# ---------------------------------------------------------------------------
@functools.partial(jax.jit, static_argnames=("num_heads", "row_tile"))
def conformer_self_attention(hidden_states, wq, bq, wk, bk, wv, bv, wo, bo,
                             attention_mask=None, *, num_heads, row_tile=256):
    """hidden_states: (B, S, H); w*: (H, H); b*: (H,);
    attention_mask (optional): additive mask broadcastable to (B, 1, S, S)."""
    B, S, H = hidden_states.shape
    D = H // num_heads
    scale = 1.0 / math.sqrt(D)
    dtype = hidden_states.dtype

    # ---- fused QKV projection (single large GEMM) ----
    x2d = hidden_states.reshape(B * S, H)
    w_qkv = jnp.concatenate([wq, wk, wv], axis=1)      # (H, 3H)
    b_qkv = jnp.concatenate([bq, bk, bv], axis=0)      # (3H,)
    qkv = _pallas_linear(x2d, w_qkv, b_qkv, row_tile=row_tile)   # (B*S, 3H)

    qkv = qkv.reshape(B, S, 3, num_heads, D)
    # (B, S, nh, D) -> (B, nh, S, D) -> (B*nh, S, D)   (wrapper-side layout plumbing)
    q_bh = qkv[:, :, 0].transpose(0, 2, 1, 3).reshape(B * num_heads, S, D)
    k_bh = qkv[:, :, 1].transpose(0, 2, 1, 3).reshape(B * num_heads, S, D)
    v_bh = qkv[:, :, 2].transpose(0, 2, 1, 3).reshape(B * num_heads, S, D)

    BH = B * num_heads
    qkv_spec = pl.BlockSpec((1, S, D), lambda i: (i, 0, 0))

    if attention_mask is not None:
        # TODO(synk): per-head masks (shape (B, nh, S, S)) are not supported; only
        # masks broadcastable to (B, 1, S, S).
        mask3 = jnp.broadcast_to(attention_mask, (B, 1, S, S)).reshape(B, S, S)
        kernel = functools.partial(_attn_kernel_masked, scale=scale)
        in_specs = [qkv_spec, qkv_spec, qkv_spec,
                    pl.BlockSpec((1, S, S), lambda i: (i // num_heads, 0, 0))]
        args = (q_bh, k_bh, v_bh, mask3)
    else:
        kernel = functools.partial(_attn_kernel, scale=scale)
        in_specs = [qkv_spec, qkv_spec, qkv_spec]
        args = (q_bh, k_bh, v_bh)

    ctx_bh, probs_bh = pl.pallas_call(
        kernel,
        out_shape=(jax.ShapeDtypeStruct((BH, S, D), dtype),
                   jax.ShapeDtypeStruct((BH, S, S), dtype)),
        grid_spec=pltpu.PrefetchScalarGridSpec(
            num_scalar_prefetch=0,
            grid=(BH,),
            in_specs=in_specs,
            out_specs=(pl.BlockSpec((1, S, D), lambda i: (i, 0, 0)),
                       pl.BlockSpec((1, S, S), lambda i: (i, 0, 0))),
        ),
        compiler_params=pltpu.CompilerParams(
            dimension_semantics=("parallel",),
            vmem_limit_bytes=64 * 1024 * 1024,
        ),
    )(*args)

    # ---- merge heads + output projection ----
    ctx2d = ctx_bh.reshape(B, num_heads, S, D).transpose(0, 2, 1, 3).reshape(B * S, H)
    out2d = _pallas_linear(ctx2d, wo, bo, row_tile=row_tile)

    probs = probs_bh.reshape(B, num_heads, S, S)
    return out2d.reshape(B, S, H), probs


# ---------------------------------------------------------------------------
# Pure-JAX reference (mirrors the PyTorch forward, position_embeddings_type=None)
# ---------------------------------------------------------------------------
def _reference(hidden_states, wq, bq, wk, bk, wv, bv, wo, bo, attention_mask, num_heads):
    B, S, H = hidden_states.shape
    D = H // num_heads
    x = hidden_states.astype(jnp.float32)
    q = (x @ wq + bq).reshape(B, S, num_heads, D).transpose(0, 2, 1, 3)
    k = (x @ wk + bk).reshape(B, S, num_heads, D).transpose(0, 2, 1, 3)
    v = (x @ wv + bv).reshape(B, S, num_heads, D).transpose(0, 2, 1, 3)
    scores = jnp.einsum("bhqd,bhkd->bhqk", q, k) / math.sqrt(D)
    if attention_mask is not None:
        scores = scores + attention_mask
    probs = jax.nn.softmax(scores, axis=-1)
    ctx = jnp.einsum("bhqk,bhkd->bhqd", probs, v)
    ctx = ctx.transpose(0, 2, 1, 3).reshape(B, S, H)
    out = ctx @ wo + bo
    return out.astype(hidden_states.dtype), probs.astype(hidden_states.dtype)


if __name__ == "__main__":
    # Small config: batch=2, seq=8, hidden_size=32, num_attention_heads=4 (head_size=8)
    B, S, H, NH = 2, 8, 32, 4

    key = jax.random.PRNGKey(0)
    keys = jax.random.split(key, 10)
    x = jax.random.normal(keys[0], (B, S, H), dtype=jnp.float32)

    def lin_init(kw, kb, fan_in, shape_w, shape_b):
        w = jax.random.uniform(kw, shape_w, jnp.float32, -1.0, 1.0) / jnp.sqrt(fan_in)
        b = jax.random.uniform(kb, shape_b, jnp.float32, -1.0, 1.0) / jnp.sqrt(fan_in)
        return w, b

    wq, bq = lin_init(keys[1], keys[2], H, (H, H), (H,))
    wk, bk = lin_init(keys[3], keys[4], H, (H, H), (H,))
    wv, bv = lin_init(keys[5], keys[6], H, (H, H), (H,))
    wo, bo = lin_init(keys[7], keys[8], H, (H, H), (H,))

    # Additive padding mask: batch 1 masks out its last 3 key positions.
    pad_lens = jnp.array([0, 3])
    valid = jnp.arange(S)[None, :] < (S - pad_lens)[:, None]          # (B, S)
    attn_mask = jnp.where(valid, 0.0, -1e9).astype(jnp.float32)[:, None, None, :]  # (B,1,1,S)

    # --- no mask ---
    out, probs = conformer_self_attention(x, wq, bq, wk, bk, wv, bv, wo, bo,
                                          attention_mask=None, num_heads=NH)
    out = jax.block_until_ready(out)
    ref_out, ref_probs = _reference(x, wq, bq, wk, bk, wv, bv, wo, bo, None, NH)
    assert out.shape == (B, S, H) and probs.shape == (B, NH, S, S)
    assert jnp.allclose(out, ref_out, atol=1e-4, rtol=1e-4), "output mismatch (no mask)"
    assert jnp.allclose(probs, ref_probs, atol=1e-4, rtol=1e-4), "probs mismatch (no mask)"

    # --- with additive attention mask ---
    out_m, probs_m = conformer_self_attention(x, wq, bq, wk, bk, wv, bv, wo, bo,
                                              attention_mask=attn_mask, num_heads=NH)
    out_m = jax.block_until_ready(out_m)
    ref_out_m, ref_probs_m = _reference(x, wq, bq, wk, bk, wv, bv, wo, bo, attn_mask, NH)
    assert jnp.allclose(out_m, ref_out_m, atol=1e-4, rtol=1e-4), "output mismatch (mask)"
    assert jnp.allclose(probs_m, ref_probs_m, atol=1e-4, rtol=1e-4), "probs mismatch (mask)"

    print("KERNEL_OK")
</pallas_src>

<mosaic_0001>
module attributes {stable_mosaic.version = 11 : i64} {
  func.func @_linear_kernel(%arg0: i32, %arg1: memref<16x32xf32, #tpu.memory_space<vmem>>, %arg2: memref<32x96xf32, #tpu.memory_space<vmem>>, %arg3: memref<1x96xf32, #tpu.memory_space<vmem>>, %arg4: memref<16x96xf32, #tpu.memory_space<vmem>>) attributes {dimension_semantics = [#tpu.dimension_semantics<parallel>], iteration_bounds = array<i64: 1>, scalar_prefetch = 0 : i64, scratch_operands = 0 : i64, tpu.core_type = #tpu.core_type<tc>, window_params = [{transform_indices = @transform_0, window_bounds = array<i64: 16, 32>}, {pipeline_mode = #tpu.pipeline_mode<synchronous>, transform_indices = @transform_1, window_bounds = array<i64: 32, 96>}, {pipeline_mode = #tpu.pipeline_mode<synchronous>, transform_indices = @transform_2, window_bounds = array<i64: 1, 96>}, {transform_indices = @transform_3, window_bounds = array<i64: 16, 96>}]} {
    %c0 = arith.constant 0 : index
    %c0_0 = arith.constant 0 : index
    %0 = vector.load %arg1[%c0, %c0_0] : memref<16x32xf32, #tpu.memory_space<vmem>>, vector<16x32xf32>
    %c0_1 = arith.constant 0 : index
    %c0_2 = arith.constant 0 : index
    %1 = vector.load %arg2[%c0_1, %c0_2] : memref<32x96xf32, #tpu.memory_space<vmem>>, vector<32x96xf32>
    %cst = arith.constant dense<0.000000e+00> : vector<16x96xf32>
    %2 = tpu.matmul %0, %1, %cst {dimension_numbers = #tpu.dot_dimension_numbers<[1], [0], [0], [1], [0, 0, 1, 1], [], []>} : vector<16x32xf32>, vector<32x96xf32>, vector<16x96xf32> -> vector<16x96xf32>
    %c0_3 = arith.constant 0 : index
    %c0_4 = arith.constant 0 : index
    %3 = vector.load %arg3[%c0_3, %c0_4] : memref<1x96xf32, #tpu.memory_space<vmem>>, vector<1x96xf32>
    %4 = vector.broadcast %3 : vector<1x96xf32> to vector<16x96xf32>
    %5 = arith.addf %2, %4 : vector<16x96xf32>
    %c0_5 = arith.constant 0 : index
    %c0_6 = arith.constant 0 : index
    %6 = vector.load %arg4[%c0_5, %c0_6] : memref<16x96xf32, #tpu.memory_space<vmem>>, vector<16x96xf32>
    tpu.vector_store %arg4[%c0_5, %c0_6], %5 {strides = array<i32>} : memref<16x96xf32, #tpu.memory_space<vmem>>, vector<16x96xf32>,
    return
  }
  func.func @transform_0(%arg0: i32) -> (i32, i32) {
    %c0_i32 = arith.constant 0 : i32
    %c0_i32_0 = arith.constant 0 : i32
    return %arg0, %c0_i32 : i32, i32
  }
  func.func @transform_1(%arg0: i32) -> (i32, i32) {
    %c0_i32 = arith.constant 0 : i32
    %c0_i32_0 = arith.constant 0 : i32
    %c0_i32_1 = arith.constant 0 : i32
    return %c0_i32, %c0_i32_0 : i32, i32
  }
  func.func @transform_2(%arg0: i32) -> (i32, i32) {
    %c0_i32 = arith.constant 0 : i32
    %c0_i32_0 = arith.constant 0 : i32
    %c0_i32_1 = arith.constant 0 : i32
    return %c0_i32, %c0_i32_0 : i32, i32
  }
  func.func @transform_3(%arg0: i32) -> (i32, i32) {
    %c0_i32 = arith.constant 0 : i32
    %c0_i32_0 = arith.constant 0 : i32
    return %arg0, %c0_i32 : i32, i32
  }
}

module attributes {stable_mosaic.version = 11 : i64} {
  func.func @_attn_kernel(%arg0: i32, %arg1: memref<1x8x8xf32, #tpu.memory_space<vmem>>, %arg2: memref<1x8x8xf32, #tpu.memory_space<vmem>>, %arg3: memref<1x8x8xf32, #tpu.memory_space<vmem>>, %arg4: memref<1x8x8xf32, #tpu.memory_space<vmem>>, %arg5: memref<1x8x8xf32, #tpu.memory_space<vmem>>) attributes {dimension_semantics = [#tpu.dimension_semantics<parallel>], iteration_bounds = array<i64: 8>, scalar_prefetch = 0 : i64, scratch_operands = 0 : i64, tpu.core_type = #tpu.core_type<tc>, window_params = [{transform_indices = @transform_0, window_bounds = array<i64: 1, 8, 8>}, {transform_indices = @transform_1, window_bounds = array<i64: 1, 8, 8>}, {transform_indices = @transform_2, window_bounds = array<i64: 1, 8, 8>}, {transform_indices = @transform_3, window_bounds = array<i64: 1, 8, 8>}, {transform_indices = @transform_4, window_bounds = array<i64: 1, 8, 8>}]} {
    %c0 = arith.constant 0 : index
    %c0_0 = arith.constant 0 : index
    %c0_1 = arith.constant 0 : index
    %0 = vector.load %arg1[%c0, %c0_0, %c0_1] : memref<1x8x8xf32, #tpu.memory_space<vmem>>, vector<1x8x8xf32>
    %1 = vector.shape_cast %0 : vector<1x8x8xf32> to vector<8x8xf32>
    %c0_2 = arith.constant 0 : index
    %c0_3 = arith.constant 0 : index
    %c0_4 = arith.constant 0 : index
    %2 = vector.load %arg2[%c0_2, %c0_3, %c0_4] : memref<1x8x8xf32, #tpu.memory_space<vmem>>, vector<1x8x8xf32>
    %3 = vector.shape_cast %2 : vector<1x8x8xf32> to vector<8x8xf32>
    %c0_5 = arith.constant 0 : index
    %c0_6 = arith.constant 0 : index
    %c0_7 = arith.constant 0 : index
    %4 = vector.load %arg3[%c0_5, %c0_6, %c0_7] : memref<1x8x8xf32, #tpu.memory_space<vmem>>, vector<1x8x8xf32>
    %5 = vector.shape_cast %4 : vector<1x8x8xf32> to vector<8x8xf32>
    %cst = arith.constant dense<0.000000e+00> : vector<8x8xf32>
    %6 = tpu.matmul %1, %3, %cst {dimension_numbers = #tpu.dot_dimension_numbers<[1], [1], [0], [0], [0, 0, 1, 0], [], []>} : vector<8x8xf32>, vector<8x8xf32>, vector<8x8xf32> -> vector<8x8xf32>
    %cst_8 = arith.constant 0.353553385 : f32
    %7 = vector.broadcast %cst_8 : f32 to vector<8x8xf32>
    %8 = arith.mulf %6, %7 : vector<8x8xf32>
    %cst_9 = arith.constant dense<0xFF800000> : vector<8xf32>
    %9 = vector.multi_reduction <maximumf>, %8, %cst_9 [1] : vector<8x8xf32> to vector<8xf32>
    %10 = vector.shape_cast %9 : vector<8xf32> to vector<8x1xf32>
    %11 = vector.broadcast %10 : vector<8x1xf32> to vector<8x8xf32>
    %12 = arith.subf %8, %11 : vector<8x8xf32>
    %13 = math.exp %12 : vector<8x8xf32>
    %cst_10 = arith.constant dense<0.000000e+00> : vector<8xf32>
    %14 = vector.multi_reduction <add>, %13, %cst_10 [1] : vector<8x8xf32> to vector<8xf32>
    %15 = vector.shape_cast %14 : vector<8xf32> to vector<8x1xf32>
    %16 = vector.broadcast %15 : vector<8x1xf32> to vector<8x8xf32>
    %17 = arith.divf %13, %16 : vector<8x8xf32>
    %cst_11 = arith.constant dense<0.000000e+00> : vector<8x8xf32>
    %18 = tpu.matmul %17, %5, %cst_11 {dimension_numbers = #tpu.dot_dimension_numbers<[1], [0], [0], [1], [0, 0, 1, 1], [], []>} : vector<8x8xf32>, vector<8x8xf32>, vector<8x8xf32> -> vector<8x8xf32>
    %c0_12 = arith.constant 0 : index
    %c0_13 = arith.constant 0 : index
    %c0_14 = arith.constant 0 : index
    %19 = vector.load %arg4[%c0_12, %c0_13, %c0_14] : memref<1x8x8xf32, #tpu.memory_space<vmem>>, vector<1x8x8xf32>
    %20 = vector.shape_cast %19 : vector<1x8x8xf32> to vector<8x8xf32>
    %21 = vector.shape_cast %18 : vector<8x8xf32> to vector<1x8x8xf32>
    tpu.vector_store %arg4[%c0_12, %c0_13, %c0_14], %21 {strides = array<i32>} : memref<1x8x8xf32, #tpu.memory_space<vmem>>, vector<1x8x8xf32>,
    %c0_15 = arith.constant 0 : index
    %c0_16 = arith.constant 0 : index
    %c0_17 = arith.constant 0 : index
    %22 = vector.load %arg5[%c0_15, %c0_16, %c0_17] : memref<1x8x8xf32, #tpu.memory_space<vmem>>, vector<1x8x8xf32>
    %23 = vector.shape_cast %22 : vector<1x8x8xf32> to vector<8x8xf32>
    %24 = vector.shape_cast %17 : vector<8x8xf32> to vector<1x8x8xf32>
    tpu.vector_store %arg5[%c0_15, %c0_16, %c0_17], %24 {strides = array<i32>} : memref<1x8x8xf32, #tpu.memory_space<vmem>>, vector<1x8x8xf32>,
    return
  }
  func.func @transform_0(%arg0: i32) -> (i32, i32, i32) {
    %c0_i32 = arith.constant 0 : i32
    %c0_i32_0 = arith.constant 0 : i32
    %c0_i32_1 = arith.constant 0 : i32
    return %arg0, %c0_i32, %c0_i32_0 : i32, i32, i32
  }
  func.func @transform_1(%arg0: i32) -> (i32, i32, i32) {
    %c0_i32 = arith.constant 0 : i32
    %c0_i32_0 = arith.constant 0 : i32
    %c0_i32_1 = arith.constant 0 : i32
    return %arg0, %c0_i32, %c0_i32_0 : i32, i32, i32
  }
  func.func @transform_2(%arg0: i32) -> (i32, i32, i32) {
    %c0_i32 = arith.constant 0 : i32
    %c0_i32_0 = arith.constant 0 : i32
    %c0_i32_1 = arith.constant 0 : i32
    return %arg0, %c0_i32, %c0_i32_0 : i32, i32, i32
  }
  func.func @transform_3(%arg0: i32) -> (i32, i32, i32) {
    %c0_i32 = arith.constant 0 : i32
    %c0_i32_0 = arith.constant 0 : i32
    %c0_i32_1 = arith.constant 0 : i32
    return %arg0, %c0_i32, %c0_i32_0 : i32, i32, i32
  }
  func.func @transform_4(%arg0: i32) -> (i32, i32, i32) {
    %c0_i32 = arith.constant 0 : i32
    %c0_i32_0 = arith.constant 0 : i32
    %c0_i32_1 = arith.constant 0 : i32
    return %arg0, %c0_i32, %c0_i32_0 : i32, i32, i32
  }
}

module attributes {stable_mosaic.version = 11 : i64} {
  func.func @_linear_kernel(%arg0: i32, %arg1: memref<16x32xf32, #tpu.memory_space<vmem>>, %arg2: memref<32x32xf32, #tpu.memory_space<vmem>>, %arg3: memref<1x32xf32, #tpu.memory_space<vmem>>, %arg4: memref<16x32xf32, #tpu.memory_space<vmem>>) attributes {dimension_semantics = [#tpu.dimension_semantics<parallel>], iteration_bounds = array<i64: 1>, scalar_prefetch = 0 : i64, scratch_operands = 0 : i64, tpu.core_type = #tpu.core_type<tc>, window_params = [{transform_indices = @transform_0, window_bounds = array<i64: 16, 32>}, {pipeline_mode = #tpu.pipeline_mode<synchronous>, transform_indices = @transform_1, window_bounds = array<i64: 32, 32>}, {pipeline_mode = #tpu.pipeline_mode<synchronous>, transform_indices = @transform_2, window_bounds = array<i64: 1, 32>}, {transform_indices = @transform_3, window_bounds = array<i64: 16, 32>}]} {
    %c0 = arith.constant 0 : index
    %c0_0 = arith.constant 0 : index
    %0 = vector.load %arg1[%c0, %c0_0] : memref<16x32xf32, #tpu.memory_space<vmem>>, vector<16x32xf32>
    %c0_1 = arith.constant 0 : index
    %c0_2 = arith.constant 0 : index
    %1 = vector.load %arg2[%c0_1, %c0_2] : memref<32x32xf32, #tpu.memory_space<vmem>>, vector<32x32xf32>
    %cst = arith.constant dense<0.000000e+00> : vector<16x32xf32>
    %2 = tpu.matmul %0, %1, %cst {dimension_numbers = #tpu.dot_dimension_numbers<[1], [0], [0], [1], [0, 0, 1, 1], [], []>} : vector<16x32xf32>, vector<32x32xf32>, vector<16x32xf32> -> vector<16x32xf32>
    %c0_3 = arith.constant 0 : index
    %c0_4 = arith.constant 0 : index
    %3 = vector.load %arg3[%c0_3, %c0_4] : memref<1x32xf32, #tpu.memory_space<vmem>>, vector<1x32xf32>
    %4 = vector.broadcast %3 : vector<1x32xf32> to vector<16x32xf32>
    %5 = arith.addf %2, %4 : vector<16x32xf32>
    %c0_5 = arith.constant 0 : index
    %c0_6 = arith.constant 0 : index
    %6 = vector.load %arg4[%c0_5, %c0_6] : memref<16x32xf32, #tpu.memory_space<vmem>>, vector<16x32xf32>
    tpu.vector_store %arg4[%c0_5, %c0_6], %5 {strides = array<i32>} : memref<16x32xf32, #tpu.memory_space<vmem>>, vector<16x32xf32>,
    return
  }
  func.func @transform_0(%arg0: i32) -> (i32, i32) {
    %c0_i32 = arith.constant 0 : i32
    %c0_i32_0 = arith.constant 0 : i32
    return %arg0, %c0_i32 : i32, i32
  }
  func.func @transform_1(%arg0: i32) -> (i32, i32) {
    %c0_i32 = arith.constant 0 : i32
    %c0_i32_0 = arith.constant 0 : i32
    %c0_i32_1 = arith.constant 0 : i32
    return %c0_i32, %c0_i32_0 : i32, i32
  }
  func.func @transform_2(%arg0: i32) -> (i32, i32) {
    %c0_i32 = arith.constant 0 : i32
    %c0_i32_0 = arith.constant 0 : i32
    %c0_i32_1 = arith.constant 0 : i32
    return %c0_i32, %c0_i32_0 : i32, i32
  }
  func.func @transform_3(%arg0: i32) -> (i32, i32) {
    %c0_i32 = arith.constant 0 : i32
    %c0_i32_0 = arith.constant 0 : i32
    return %arg0, %c0_i32 : i32, i32
  }
}

</mosaic_0001>

<llo_original>
// kernel: conformer_self_attention.3
$region0: #{conformer_self_attention.3}
  #allocation0 [shape = 'u32[]', space=smem, size = 0x4, offset = 0x4, fixed_abs, tag = 'smem constant byte address 0x4 - core index']
  #allocation1 [shape = 'u32[144,128]{1,0:T(1,128)}', space=vmem, size = 0x12000, scoped, tag = 'internal scratch']
  %s0 = inlined_call_operand.hbm [shape: f32[16,32], index: 0, kind: input, shape index: {}]
  %s1 = inlined_call_operand.hbm [shape: f32[32,96], index: 1, kind: input, shape index: {}]
  %s2 = inlined_call_operand.hbm [shape: f32[1,96], index: 2, kind: input, shape index: {}]
  %s3 = inlined_call_operand.hbm [shape: f32[16,96], index: 3, kind: output, shape index: {}]
  %s4 = sld [smem:[#allocation0]]
  $region34: #{conformer_self_attention.3} parent=0
    _
  %s6 = ssub.s32 1, %s4
  %s7 = scalar_select 0, %s6, %s4
  $region1: #{conformer_self_attention.3} parent=0
    #allocation2 [shape = 'u8[8192]{0}', space=vmem, size = 0x2000, scoped, tag = 'input window, operand 0, single buffered']
    #allocation3 [shape = 's32[1]{0}', space=sflag, size = 0x4, scoped, tag = 'scoped memory for conformer_self_attention.3']
    #allocation4 [shape = 's32[1]{0}', space=sflag, size = 0x4, scoped, tag = 'scoped memory for conformer_self_attention.3']
    #allocation5 [shape = 'u8[16384]{0}', space=vmem, size = 0x4000, scoped, tag = 'input window, operand 1, single buffered']
    #allocation6 [shape = 's32[1]{0}', space=sflag, size = 0x4, scoped, tag = 'scoped memory for conformer_self_attention.3']
    #allocation7 [shape = 'u8[512]{0}', space=vmem, size = 0x400, scoped, tag = 'input window, operand 2, single buffered']
    #allocation8 [shape = 'u8[8192]{0}', space=vmem, size = 0x2000, scoped, tag = 'output window, operand 0, single buffered']
    %8 = vsyncpa [#allocation3], 0
    %9 = vsyncpa [#allocation6], 0
    %10 = vsyncpa [#allocation4], 0
    // Predicated region
    $region2: #{conformer_self_attention.3} parent=1 // pred_check
      _
    $region3: #{conformer_self_attention.3} parent=1 // pred_check_branch
      %12 = sbr.rel (0) target = $region5
    $region4: #{conformer_self_attention.3} parent=1 // pred_region
      %s14 = ssub.s32 256, 256
      %15 = vsyncadd [#allocation3], %s14
      %s16 = sshll.u32 [#allocation2], 4
      %s17 = int_to_ptr.vmem [resolvable:$true] %s16
      %22 = dma.hbm_to_vmem [thread:$0]  %s0, 256, %s17, [#allocation3], 128, 128, 8
    $region5: #{conformer_self_attention.3} parent=1 // pred_fallthru
      _
    // Predicated region
    $region6: #{conformer_self_attention.3} parent=1 // pred_check
      _
    $region7: #{conformer_self_attention.3} parent=1 // pred_check_branch
      %24 = sbr.rel (0) target = $region9
    $region8: #{conformer_self_attention.3} parent=1 // pred_region
      %s26 = ssub.s32 512, 512
      %27 = vsyncadd [#allocation6], %s26
      %s28 = sshll.u32 [#allocation5], 4
      %s29 = int_to_ptr.vmem [resolvable:$true] %s28
      %34 = dma.hbm_to_vmem [thread:$0]  %s1, 512, %s29, [#allocation6], 128, 128, 8
    $region9: #{conformer_self_attention.3} parent=1 // pred_fallthru
      _
    // Predicated region
    $region10: #{conformer_self_attention.3} parent=1 // pred_check
      _
    $region11: #{conformer_self_attention.3} parent=1 // pred_check_branch
      %36 = sbr.rel (0) target = $region13
    $region12: #{conformer_self_attention.3} parent=1 // pred_region
      %s38 = ssub.s32 16, 16
      %39 = vsyncadd [#allocation6], %s38
      %s41 = sshll.u32 [#allocation7], 4
      %s42 = int_to_ptr.vmem [resolvable:$true] %s41
      %44 = dma.hbm_to_vmem [thread:$0]  %s2, 16, %s42, [#allocation6]
    $region13: #{conformer_self_attention.3} parent=1 // pred_fallthru
      _
    // Predicated region
    $region14: #{conformer_self_attention.3} parent=1 // pred_check
      _
    $region15: #{conformer_self_attention.3} parent=1 // pred_check_branch
      %46 = sbr.rel (0) target = $region17
    $region16: #{conformer_self_attention.3} parent=1 // pred_region
      %47 = dma.done [#allocation3], 256
    $region17: #{conformer_self_attention.3} parent=1 // pred_fallthru
      _
    // Predicated region
    $region18: #{conformer_self_attention.3} parent=1 // pred_check
      _
    $region19: #{conformer_self_attention.3} parent=1 // pred_check_branch
      %49 = sbr.rel (0) target = $region21
    $region20: #{conformer_self_attention.3} parent=1 // pred_region
      %50 = dma.done [#allocation6], 512
    $region21: #{conformer_self_attention.3} parent=1 // pred_fallthru
      _
    // Predicated region
    $region22: #{conformer_self_attention.3} parent=1 // pred_check
      _
    $region23: #{conformer_self_attention.3} parent=1 // pred_check_branch
      %52 = sbr.rel (0) target = $region25
    $region24: #{conformer_self_attention.3} parent=1 // pred_region
      %53 = dma.done [#allocation6], 16
    $region25: #{conformer_self_attention.3} parent=1 // pred_fallthru
      _
    %v54 = vld [vmem:[#allocation2] sm:$0xff]
    %v55 = vld [vmem:[#allocation2 + $0x8] sm:$0xff]
    %v56 = vld [vmem:[#allocation5] sm:$0xff]
    %v57 = vld [vmem:[#allocation5 + $0x8] sm:$0xff]
    %v58 = vld [vmem:[#allocation5 + $0x10] sm:$0xff]
    %v59 = vld [vmem:[#allocation5 + $0x18] sm:$0xff]
    %v60 = vld [vmem:[#allocation7] sm:$0x1]
    %v62 = vlaneseq
    %v63 = vshrl.u32 %v62, 7
    %v64 = vsub.s32 0, %v63
    %v65 = vrot.slane %v60, %v64
    %vm67 = vcmask 261120
    %v69 = vsel %vm67, %v54, 0
    %v72 = vsel %vm67, %v55, 0
    %74 = vmatprep.subr.mxu0 0.0
    %75 = vmatpush1.msra.mxu0 %v56
    %76 = vmatprep.subr.mxu0 0.0
    %77 = vmatpush1.msra.mxu0 %v57
    %78 = vmatprep.subr.mxu0 0.0
    %79 = vmatpush1.msra.mxu0 %v58
    %80 = vmatprep.subr.mxu0 0.0
    %81 = vmatpush1.msra.mxu0 %v59
    %82 = vmatprep.subr.mxu0 0.0
    %83 = vmatpush1.msra.mxu0 0.0
    %84 = vmatprep.subr.mxu0 0.0
    %85 = vmatpush1.msra.mxu0 0.0
    %86 = vmatprep.subr.mxu0 0.0
    %87 = vmatpush1.msra.mxu0 0.0
    %88 = vmatprep.subr.mxu0 0.0
    %89 = vmatpush1.msra.mxu0 0.0
    %90 = vmatprep.subr.mxu0 0.0
    %91 = vmatpush1.msra.mxu0 0.0
    %92 = vmatprep.subr.mxu0 0.0
    %93 = vmatpush1.msra.mxu0 0.0
    %94 = vmatprep.subr.mxu0 0.0
    %95 = vmatpush1.msra.mxu0 0.0
    %96 = vmatprep.subr.mxu0 0.0
    %97 = vmatpush1.msra.mxu0 0.0
    %98 = vmatprep.subr.mxu0 0.0
    %99 = vmatpush1.msra.mxu0 0.0
    %100 = vmatprep.subr.mxu0 0.0
    %101 = vmatpush1.msra.mxu0 0.0
    %102 = vmatprep.subr.mxu0 0.0
    %103 = vmatpush1.msra.mxu0 0.0
    %104 = vmatprep.subr.mxu0 0.0
    %105 = vmatpush1.msra.mxu0 0.0
    %106 = vmatprep.subr.mxu0 0.0
    %107 = vmatpush1.msra.mxu0 0.0
    %108 = vmatprep.subr.mxu0 0.0
    %109 = vmatpush1.msra.mxu0 0.0
    %110 = vmatprep.subr.mxu0 0.0
    %111 = vmatpush1.msra.mxu0 0.0
    %112 = vmatprep.subr.mxu0 0.0
    %113 = vmatpush1.msra.mxu0 0.0
    %114 = vmatprep.subr.mxu0 0.0
    %115 = vmatpush1.msra.mxu0 0.0
    %116 = vmatprep.subr.mxu0 0.0
    %117 = vmatpush1.msra.mxu0 0.0
    %118 = vmatprep.subr.mxu0 0.0
    %119 = vmatpush1.msra.mxu0 0.0
    %120 = vmatprep.subr.mxu0 0.0
    %121 = vmatpush1.msra.mxu0 0.0
    %122 = vmatprep.subr.mxu0 0.0
    %123 = vmatpush1.msra.mxu0 0.0
    %124 = vmatprep.subr.mxu0 0.0
    %125 = vmatpush1.msra.mxu0 0.0
    %126 = vmatprep.subr.mxu0 0.0
    %127 = vmatpush1.msra.mxu0 0.0
    %128 = vmatprep.subr.mxu0 0.0
    %129 = vmatpush1.msra.mxu0 0.0
    %130 = vmatprep.subr.mxu0 0.0
    %131 = vmatpush1.msra.mxu0 0.0
    %132 = vmatprep.subr.mxu0 0.0
    %133 = vmatpush1.msra.mxu0 0.0
    %134 = vmatprep.subr.mxu0 0.0
    %135 = vmatpush1.msra.mxu0 0.0
    %136 = vmatprep.subr.mxu0 0.0
    %137 = vmatpush1.msra.mxu0 0.0
    %138 = vmatprep.mubr.f32.mxu0 0.0
    %139 = vmatmul.mubr.f32.gmra.mrb[0].mxu0 %v69
    %v140 = vpop.f32.mrb[0].mxu0
    %v141 = vadd.f32 %v65, %v140
    %v142 = vpop.f32.mrb[0].mxu0
    %143 = vmatprep.mubr.f32.mxu0 0.0
    %144 = vmatmul.mubr.f32.gmra.mrb[0].mxu0 %v72
    %v145 = vpop.f32.mrb[0].mxu0
    %v146 = vadd.f32 %v65, %v145
    %v147 = vpop.f32.mrb[0].mxu0
    %148 = vdwg.mxu0
    %vm149 = vcmask 785408
    %150 = vst.msk [vmem:[#allocation8] sm:$0xff] %vm149, %v141
    %151 = vst.msk [vmem:[#allocation8 + $0x8] sm:$0xff] %vm149, %v146
    // Predicated region
    $region26: #{conformer_self_attention.3} parent=1 // pred_check
      _
    $region27: #{conformer_self_attention.3} parent=1 // pred_check_branch
      %153 = sbr.rel (0) target = $region29
    $region28: #{conformer_self_attention.3} parent=1 // pred_region
      %s155 = ssub.s32 256, 256
      %156 = vsyncadd [#allocation4], %s155
      %s157 = sshll.u32 [#allocation8], 4
      %s158 = int_to_ptr.vmem [resolvable:$true] %s157
      %163 = dma.vmem_to_hbm [thread:$0]  %s158, 256, %s3, [#allocation4], 128, 128, 8
    $region29: #{conformer_self_attention.3} parent=1 // pred_fallthru
      _
    // Predicated region
    $region30: #{conformer_self_attention.3} parent=1 // pred_check
      _
    $region31: #{conformer_self_attention.3} parent=1 // pred_check_branch
      %165 = sbr.rel (0) target = $region33
    $region32: #{conformer_self_attention.3} parent=1 // pred_region
      %166 = dma.done [#allocation4], 256
    $region33: #{conformer_self_attention.3} parent=1 // pred_fallthru
      _
    %167 = vsyncpa [#allocation3], 1
    %168 = vsyncpa [#allocation6], 1
    %169 = vsyncpa [#allocation4], 1

// kernel: conformer_self_attention.5
$region0: #{conformer_self_attention.5}
  #allocation0 [shape = 'u32[]', space=smem, size = 0x4, offset = 0x4, fixed_abs, tag = 'smem constant byte address 0x4 - core index']
  #allocation1 [shape = 'u32[144,128]{1,0:T(1,128)}', space=vmem, size = 0x12000, scoped, tag = 'internal scratch']
  %s0 = inlined_call_operand.hbm [shape: f32[16,32], index: 0, kind: input, shape index: {}]
  %s1 = inlined_call_operand.hbm [shape: f32[32,32], index: 1, kind: input, shape index: {}]
  %s2 = inlined_call_operand.hbm [shape: f32[1,32], index: 2, kind: input, shape index: {}]
  %s3 = inlined_call_operand.hbm [shape: f32[16,32], index: 3, kind: output, shape index: {}]
  %s4 = sld [smem:[#allocation0]]
  $region34: #{conformer_self_attention.5} parent=0
    _
  %s6 = ssub.s32 1, %s4
  %s7 = scalar_select 0, %s6, %s4
  $region1: #{conformer_self_attention.5} parent=0
    #allocation2 [shape = 'u8[8192]{0}', space=vmem, size = 0x2000, scoped, tag = 'input window, operand 0, single buffered']
    #allocation3 [shape = 's32[1]{0}', space=sflag, size = 0x4, scoped, tag = 'scoped memory for conformer_self_attention.5']
    #allocation4 [shape = 's32[1]{0}', space=sflag, size = 0x4, scoped, tag = 'scoped memory for conformer_self_attention.5']
    #allocation5 [shape = 'u8[16384]{0}', space=vmem, size = 0x4000, scoped, tag = 'input window, operand 1, single buffered']
    #allocation6 [shape = 's32[1]{0}', space=sflag, size = 0x4, scoped, tag = 'scoped memory for conformer_self_attention.5']
    #allocation7 [shape = 'u8[512]{0}', space=vmem, size = 0x400, scoped, tag = 'input window, operand 2, single buffered']
    #allocation8 [shape = 'u8[8192]{0}', space=vmem, size = 0x2000, scoped, tag = 'output window, operand 0, single buffered']
    %8 = vsyncpa [#allocation3], 0
    %9 = vsyncpa [#allocation6], 0
    %10 = vsyncpa [#allocation4], 0
    // Predicated region
    $region2: #{conformer_self_attention.5} parent=1 // pred_check
      _
    $region3: #{conformer_self_attention.5} parent=1 // pred_check_branch
      %12 = sbr.rel (0) target = $region5
    $region4: #{conformer_self_attention.5} parent=1 // pred_region
      %s14 = ssub.s32 256, 256
      %15 = vsyncadd [#allocation3], %s14
      %s16 = sshll.u32 [#allocation2], 4
      %s17 = int_to_ptr.vmem [resolvable:$true] %s16
      %22 = dma.hbm_to_vmem [thread:$0]  %s0, 256, %s17, [#allocation3], 128, 128, 8
    $region5: #{conformer_self_attention.5} parent=1 // pred_fallthru
      _
    // Predicated region
    $region6: #{conformer_self_attention.5} parent=1 // pred_check
      _
    $region7: #{conformer_self_attention.5} parent=1 // pred_check_branch
      %24 = sbr.rel (0) target = $region9
    $region8: #{conformer_self_attention.5} parent=1 // pred_region
      %s26 = ssub.s32 512, 512
      %27 = vsyncadd [#allocation6], %s26
      %s28 = sshll.u32 [#allocation5], 4
      %s29 = int_to_ptr.vmem [resolvable:$true] %s28
      %34 = dma.hbm_to_vmem [thread:$0]  %s1, 512, %s29, [#allocation6], 128, 128, 8
    $region9: #{conformer_self_attention.5} parent=1 // pred_fallthru
      _
    // Predicated region
    $region10: #{conformer_self_attention.5} parent=1 // pred_check
      _
    $region11: #{conformer_self_attention.5} parent=1 // pred_check_branch
      %36 = sbr.rel (0) target = $region13
    $region12: #{conformer_self_attention.5} parent=1 // pred_region
      %s38 = ssub.s32 16, 16
      %39 = vsyncadd [#allocation6], %s38
      %s41 = sshll.u32 [#allocation7], 4
      %s42 = int_to_ptr.vmem [resolvable:$true] %s41
      %44 = dma.hbm_to_vmem [thread:$0]  %s2, 16, %s42, [#allocation6]
    $region13: #{conformer_self_attention.5} parent=1 // pred_fallthru
      _
    // Predicated region
    $region14: #{conformer_self_attention.5} parent=1 // pred_check
      _
    $region15: #{conformer_self_attention.5} parent=1 // pred_check_branch
      %46 = sbr.rel (0) target = $region17
    $region16: #{conformer_self_attention.5} parent=1 // pred_region
      %47 = dma.done [#allocation3], 256
    $region17: #{conformer_self_attention.5} parent=1 // pred_fallthru
      _
    // Predicated region
    $region18: #{conformer_self_attention.5} parent=1 // pred_check
      _
    $region19: #{conformer_self_attention.5} parent=1 // pred_check_branch
      %49 = sbr.rel (0) target = $region21
    $region20: #{conformer_self_attention.5} parent=1 // pred_region
      %50 = dma.done [#allocation6], 512
    $region21: #{conformer_self_attention.5} parent=1 // pred_fallthru
      _
    // Predicated region
    $region22: #{conformer_self_attention.5} parent=1 // pred_check
      _
    $region23: #{conformer_self_attention.5} parent=1 // pred_check_branch
      %52 = sbr.rel (0) target = $region25
    $region24: #{conformer_self_attention.5} parent=1 // pred_region
      %53 = dma.done [#allocation6], 16
    $region25: #{conformer_self_attention.5} parent=1 // pred_fallthru
      _
    %v54 = vld [vmem:[#allocation2] sm:$0xff]
    %v55 = vld [vmem:[#allocation2 + $0x8] sm:$0xff]
    %v56 = vld [vmem:[#allocation5] sm:$0xff]
    %v57 = vld [vmem:[#allocation5 + $0x8] sm:$0xff]
    %v58 = vld [vmem:[#allocation5 + $0x10] sm:$0xff]
    %v59 = vld [vmem:[#allocation5 + $0x18] sm:$0xff]
    %v60 = vld [vmem:[#allocation7] sm:$0x1]
    %v62 = vlaneseq
    %v63 = vshrl.u32 %v62, 7
    %v64 = vsub.s32 0, %v63
    %v65 = vrot.slane %v60, %v64
    %vm67 = vcmask 261120
    %v69 = vsel %vm67, %v54, 0
    %v72 = vsel %vm67, %v55, 0
    %74 = vmatprep.subr.mxu0 0.0
    %75 = vmatpush1.msra.mxu0 %v56
    %76 = vmatprep.subr.mxu0 0.0
    %77 = vmatpush1.msra.mxu0 %v57
    %78 = vmatprep.subr.mxu0 0.0
    %79 = vmatpush1.msra.mxu0 %v58
    %80 = vmatprep.subr.mxu0 0.0
    %81 = vmatpush1.msra.mxu0 %v59
    %82 = vmatprep.subr.mxu0 0.0
    %83 = vmatpush1.msra.mxu0 0.0
    %84 = vmatprep.subr.mxu0 0.0
    %85 = vmatpush1.msra.mxu0 0.0
    %86 = vmatprep.subr.mxu0 0.0
    %87 = vmatpush1.msra.mxu0 0.0
    %88 = vmatprep.subr.mxu0 0.0
    %89 = vmatpush1.msra.mxu0 0.0
    %90 = vmatprep.subr.mxu0 0.0
    %91 = vmatpush1.msra.mxu0 0.0
    %92 = vmatprep.subr.mxu0 0.0
    %93 = vmatpush1.msra.mxu0 0.0
    %94 = vmatprep.subr.mxu0 0.0
    %95 = vmatpush1.msra.mxu0 0.0
    %96 = vmatprep.subr.mxu0 0.0
    %97 = vmatpush1.msra.mxu0 0.0
    %98 = vmatprep.subr.mxu0 0.0
    %99 = vmatpush1.msra.mxu0 0.0
    %100 = vmatprep.subr.mxu0 0.0
    %101 = vmatpush1.msra.mxu0 0.0
    %102 = vmatprep.subr.mxu0 0.0
    %103 = vmatpush1.msra.mxu0 0.0
    %104 = vmatprep.subr.mxu0 0.0
    %105 = vmatpush1.msra.mxu0 0.0
    %106 = vmatprep.subr.mxu0 0.0
    %107 = vmatpush1.msra.mxu0 0.0
    %108 = vmatprep.subr.mxu0 0.0
    %109 = vmatpush1.msra.mxu0 0.0
    %110 = vmatprep.subr.mxu0 0.0
    %111 = vmatpush1.msra.mxu0 0.0
    %112 = vmatprep.subr.mxu0 0.0
    %113 = vmatpush1.msra.mxu0 0.0
    %114 = vmatprep.subr.mxu0 0.0
    %115 = vmatpush1.msra.mxu0 0.0
    %116 = vmatprep.subr.mxu0 0.0
    %117 = vmatpush1.msra.mxu0 0.0
    %118 = vmatprep.subr.mxu0 0.0
    %119 = vmatpush1.msra.mxu0 0.0
    %120 = vmatprep.subr.mxu0 0.0
    %121 = vmatpush1.msra.mxu0 0.0
    %122 = vmatprep.subr.mxu0 0.0
    %123 = vmatpush1.msra.mxu0 0.0
    %124 = vmatprep.subr.mxu0 0.0
    %125 = vmatpush1.msra.mxu0 0.0
    %126 = vmatprep.subr.mxu0 0.0
    %127 = vmatpush1.msra.mxu0 0.0
    %128 = vmatprep.subr.mxu0 0.0
    %129 = vmatpush1.msra.mxu0 0.0
    %130 = vmatprep.subr.mxu0 0.0
    %131 = vmatpush1.msra.mxu0 0.0
    %132 = vmatprep.subr.mxu0 0.0
    %133 = vmatpush1.msra.mxu0 0.0
    %134 = vmatprep.subr.mxu0 0.0
    %135 = vmatpush1.msra.mxu0 0.0
    %136 = vmatprep.subr.mxu0 0.0
    %137 = vmatpush1.msra.mxu0 0.0
    %138 = vmatprep.mubr.f32.mxu0 0.0
    %139 = vmatmul.mubr.f32.gmra.mrb[0].mxu0 %v69
    %v140 = vpop.f32.mrb[0].mxu0
    %v141 = vadd.f32 %v65, %v140
    %v142 = vpop.f32.mrb[0].mxu0
    %143 = vmatprep.mubr.f32.mxu0 0.0
    %144 = vmatmul.mubr.f32.gmra.mrb[0].mxu0 %v72
    %v145 = vpop.f32.mrb[0].mxu0
    %v146 = vadd.f32 %v65, %v145
    %v147 = vpop.f32.mrb[0].mxu0
    %148 = vdwg.mxu0
    %149 = vst.msk [vmem:[#allocation8] sm:$0xff] %vm67, %v141
    %150 = vst.msk [vmem:[#allocation8 + $0x8] sm:$0xff] %vm67, %v146
    // Predicated region
    $region26: #{conformer_self_attention.5} parent=1 // pred_check
      _
    $region27: #{conformer_self_attention.5} parent=1 // pred_check_branch
      %152 = sbr.rel (0) target = $region29
    $region28: #{conformer_self_attention.5} parent=1 // pred_region
      %s154 = ssub.s32 256, 256
      %155 = vsyncadd [#allocation4], %s154
      %s156 = sshll.u32 [#allocation8], 4
      %s157 = int_to_ptr.vmem [resolvable:$true] %s156
      %162 = dma.vmem_to_hbm [thread:$0]  %s157, 256, %s3, [#allocation4], 128, 128, 8
    $region29: #{conformer_self_attention.5} parent=1 // pred_fallthru
      _
    // Predicated region
    $region30: #{conformer_self_attention.5} parent=1 // pred_check
      _
    $region31: #{conformer_self_attention.5} parent=1 // pred_check_branch
      %164 = sbr.rel (0) target = $region33
    $region32: #{conformer_self_attention.5} parent=1 // pred_region
      %165 = dma.done [#allocation4], 256
    $region33: #{conformer_self_attention.5} parent=1 // pred_fallthru
      _
    %166 = vsyncpa [#allocation3], 1
    %167 = vsyncpa [#allocation6], 1
    %168 = vsyncpa [#allocation4], 1

// kernel: conformer_self_attention.4
$region0: #{conformer_self_attention.4}
  #allocation0 [shape = 'u32[]', space=smem, size = 0x4, offset = 0x4, fixed_abs, tag = 'smem constant byte address 0x4 - core index']
  #allocation1 [shape = 'u32[144,128]{1,0:T(1,128)}', space=vmem, size = 0x12000, scoped, tag = 'internal scratch']
  %s0 = inlined_call_operand.hbm [shape: f32[8,8,8], index: 0, kind: input, shape index: {}]
  %s1 = inlined_call_operand.hbm [shape: f32[8,8,8], index: 1, kind: input, shape index: {}]
  %s2 = inlined_call_operand.hbm [shape: f32[8,8,8], index: 2, kind: input, shape index: {}]
  %s3 = inlined_call_operand.hbm [shape: f32[8,8,8], index: 3, kind: output, shape index: {0}]
  %s4 = inlined_call_operand.hbm [shape: f32[8,8,8], index: 4, kind: output, shape index: {1}]
  %5 = xla_tuple %s3, %s4
  %s6 = sld [smem:[#allocation0]]
  $region65: #{conformer_self_attention.4} parent=0
    _
  %s8 = ssub.s32 1, %s6
  %s9 = scalar_select 0, %s8, %s6
  $region1: #{conformer_self_attention.4} parent=0
    #allocation2 [shape = 'u8[8192]{0}', space=vmem, size = 0x2000, scoped, tag = 'input window, operand 0']
    #allocation3 [shape = 's32[2]{0}', space=sflag, size = 0x8, scoped, tag = 'scoped memory for conformer_self_attention.4']
    #allocation4 [shape = 's32[2]{0}', space=sflag, size = 0x8, scoped, tag = 'scoped memory for conformer_self_attention.4']
    #allocation5 [shape = 'u8[8192]{0}', space=vmem, size = 0x2000, scoped, tag = 'input window, operand 1']
    #allocation6 [shape = 's32[2]{0}', space=sflag, size = 0x8, scoped, tag = 'scoped memory for conformer_self_attention.4']
    #allocation7 [shape = 'u8[8192]{0}', space=vmem, size = 0x2000, scoped, tag = 'input window, operand 2']
    #allocation8 [shape = 'u8[8192]{0}', space=vmem, size = 0x2000, scoped, tag = 'output window, operand 0']
    #allocation9 [shape = 'u8[8192]{0}', space=vmem, size = 0x2000, scoped, tag = 'output window, operand 1']
    #allocation10 [shape = 's32[2]{0}', space=sflag, size = 0x8, scoped, tag = 'scoped memory for conformer_self_attention.4']
    %10 = vsyncpa [#allocation3], 0
    %s11 = scalar_lea.sflag [#allocation3], 1
    %12 = vsyncpa %s11, 0
    %13 = vsyncpa [#allocation6], 0
    %s14 = scalar_lea.sflag [#allocation6], 1
    %15 = vsyncpa %s14, 0
    %16 = vsyncpa [#allocation4], 0
    %s17 = scalar_lea.sflag [#allocation4], 1
    %18 = vsyncpa %s17, 0
    %19 = vsyncpa [#allocation10], 0
    %s20 = scalar_lea.sflag [#allocation10], 1
    %21 = vsyncpa %s20, 0
    loop: start=0, step=1, limit=10
    $region2: #{conformer_self_attention.4} parent=1 // loop_pre_header
      _
    $region3: #{conformer_self_attention.4} parent=1 // loop_header
      %s23 = sphi 0, %s27
      %p24 = scmp.ge.s32.totalorder %s23, 10
      %s33 = sphi 0, %s35
      %s36 = sphi 0, %s33
      %s37 = sphi 0, %s36
      %s53 = sphi 0, %s37
      %s59 = sphi 0, %s61
      %s62 = sphi 0, %s59
      %s63 = sphi 0, %s62
      %s79 = sphi 0, %s63
      %s85 = sphi 0, %s87
      %s88 = sphi 0, %s85
      %s89 = sphi 0, %s88
      %s105 = sphi 0, %s89
      %s111 = sphi 0, %s113
      %s114 = sphi 0, %s111
      %s115 = sphi 0, %s114
      %s131 = sphi 0, %s115
      %s137 = sphi 0, %s139
      %s140 = sphi 0, %s137
      %s141 = sphi 0, %s140
      %s157 = sphi 0, %s141
    $region4: #{conformer_self_attention.4} parent=1 // loop_header_branch
      %26 = sbr.rel (%p24) target = $region8
    $region5: #{conformer_self_attention.4} parent=1 // loop_body
      %s28 = ssub.s32 %s23, 1
      %s29 = ssub.s32 %s23, 2
      %s30 = sadd.s32 %s23, 1
      %s31 = ssub.s32 %s23, %s30
      %p32 = scmp.eq.s32.totalorder %s31, 0
      %s34 = sadd.s32 %s33, 1
      %s35 = scalar_select %p32, %s33, %s34
      %p38 = pneg %p32
      %p39 = scmp.eq.s32.totalorder %s23, 7
      %p40 = por %p38, %p39
      %p41 = scmp.ne.s32.totalorder %s33, %s36
      %p42 = scmp.eq.s32.totalorder %s23, 0
      %p43 = por %p41, %p42
      %p44 = scmp.ne.s32.totalorder %s33, %s36
      %p45 = scmp.eq.s32.totalorder %s28, 7
      %p46 = por %p44, %p45
      %p47 = scmp.ne.s32.totalorder %s36, %s37
      %p48 = scmp.eq.s32.totalorder %s28, 0
      %p49 = por %p47, %p48
      %p50 = scmp.ne.s32.totalorder %s36, %s37
      %p51 = scmp.eq.s32.totalorder %s29, 7
      %p52 = por %p50, %p51
      %p54 = scmp.ne.s32.totalorder %s37, %s53
      %p55 = scmp.eq.s32.totalorder %s29, 0
      %p56 = por %p54, %p55
      %s57 = ssub.s32 %s23, %s30
      %p58 = scmp.eq.s32.totalorder %s57, 0
      %s60 = sadd.s32 %s59, 1
      %s61 = scalar_select %p58, %s59, %s60
      %p64 = pneg %p58
      %p65 = scmp.eq.s32.totalorder %s23, 7
      %p66 = por %p64, %p65
      %p67 = scmp.ne.s32.totalorder %s59, %s62
      %p68 = scmp.eq.s32.totalorder %s23, 0
      %p69 = por %p67, %p68
      %p70 = scmp.ne.s32.totalorder %s59, %s62
      %p71 = scmp.eq.s32.totalorder %s28, 7
      %p72 = por %p70, %p71
      %p73 = scmp.ne.s32.totalorder %s62, %s63
      %p74 = scmp.eq.s32.totalorder %s28, 0
      %p75 = por %p73, %p74
      %p76 = scmp.ne.s32.totalorder %s62, %s63
      %p77 = scmp.eq.s32.totalorder %s29, 7
      %p78 = por %p76, %p77
      %p80 = scmp.ne.s32.totalorder %s63, %s79
      %p81 = scmp.eq.s32.totalorder %s29, 0
      %p82 = por %p80, %p81
      %s83 = ssub.s32 %s23, %s30
      %p84 = scmp.eq.s32.totalorder %s83, 0
      %s86 = sadd.s32 %s85, 1
      %s87 = scalar_select %p84, %s85, %s86
      %p90 = pneg %p84
      %p91 = scmp.eq.s32.totalorder %s23, 7
      %p92 = por %p90, %p91
      %p93 = scmp.ne.s32.totalorder %s85, %s88
      %p94 = scmp.eq.s32.totalorder %s23, 0
      %p95 = por %p93, %p94
      %p96 = scmp.ne.s32.totalorder %s85, %s88
      %p97 = scmp.eq.s32.totalorder %s28, 7
      %p98 = por %p96, %p97
      %p99 = scmp.ne.s32.totalorder %s88, %s89
      %p100 = scmp.eq.s32.totalorder %s28, 0
      %p101 = por %p99, %p100
      %p102 = scmp.ne.s32.totalorder %s88, %s89
      %p103 = scmp.eq.s32.totalorder %s29, 7
      %p104 = por %p102, %p103
      %p106 = scmp.ne.s32.totalorder %s89, %s105
      %p107 = scmp.eq.s32.totalorder %s29, 0
      %p108 = por %p106, %p107
      %s109 = ssub.s32 %s23, %s30
      %p110 = scmp.eq.s32.totalorder %s109, 0
      %s112 = sadd.s32 %s111, 1
      %s113 = scalar_select %p110, %s111, %s112
      %p116 = pneg %p110
      %p117 = scmp.eq.s32.totalorder %s23, 7
      %p118 = por %p116, %p117
      %p119 = scmp.ne.s32.totalorder %s111, %s114
      %p120 = scmp.eq.s32.totalorder %s23, 0
      %p121 = por %p119, %p120
      %p122 = scmp.ne.s32.totalorder %s111, %s114
      %p123 = scmp.eq.s32.totalorder %s28, 7
      %p124 = por %p122, %p123
      %p125 = scmp.ne.s32.totalorder %s114, %s115
      %p126 = scmp.eq.s32.totalorder %s28, 0
      %p127 = por %p125, %p126
      %p128 = scmp.ne.s32.totalorder %s114, %s115
      %p129 = scmp.eq.s32.totalorder %s29, 7
      %p130 = por %p128, %p129
      %p132 = scmp.ne.s32.totalorder %s115, %s131
      %p133 = scmp.eq.s32.totalorder %s29, 0
      %p134 = por %p132, %p133
      %s135 = ssub.s32 %s23, %s30
      %p136 = scmp.eq.s32.totalorder %s135, 0
      %s138 = sadd.s32 %s137, 1
      %s139 = scalar_select %p136, %s137, %s138
      %p142 = pneg %p136
      %p143 = scmp.eq.s32.totalorder %s23, 7
      %p144 = por %p142, %p143
      %p145 = scmp.ne.s32.totalorder %s137, %s140
      %p146 = scmp.eq.s32.totalorder %s23, 0
      %p147 = por %p145, %p146
      %p148 = scmp.ne.s32.totalorder %s137, %s140
      %p149 = scmp.eq.s32.totalorder %s28, 7
      %p150 = por %p148, %p149
      %p151 = scmp.ne.s32.totalorder %s140, %s141
      %p152 = scmp.eq.s32.totalorder %s28, 0
      %p153 = por %p151, %p152
      %p154 = scmp.ne.s32.totalorder %s140, %s141
      %p155 = scmp.eq.s32.totalorder %s29, 7
      %p156 = por %p154, %p155
      %p158 = scmp.ne.s32.totalorder %s141, %s157
      %p159 = scmp.eq.s32.totalorder %s29, 0
      %p160 = por %p158, %p159
      %p161 = scmp.le.s32.totalorder 1, %s23
      %p162 = scmp.lt.s32.totalorder %s23, 9
      %p163 = pnand %p161, %p162
      %p164 = pneg %p163
      // Predicated region
      $region9: #{conformer_self_attention.4} parent=5 // pred_check
        _
      $region10: #{conformer_self_attention.4} parent=5 // pred_check_branch
        %166 = sbr.rel (%p163) target = $region12
      $region11: #{conformer_self_attention.4} parent=5 // pred_region
        %s167 = ssub.s32 %s23, 1
      $region12: #{conformer_self_attention.4} parent=5 // pred_fallthru
        _
      %p168 = scmp.lt.s32.totalorder %s23, 8
      // Predicated region
      $region13: #{conformer_self_attention.4} parent=5 // pred_check
        %p169 = pneg %p168
      $region14: #{conformer_self_attention.4} parent=5 // pred_check_branch
        %171 = sbr.rel (%p169) target = $region16
      $region15: #{conformer_self_attention.4} parent=5 // pred_region
        // Predicated region
        $region17: #{conformer_self_attention.4} parent=15 // pred_check
          %p172 = pneg %p43
        $region18: #{conformer_self_attention.4} parent=15 // pred_check_branch
          %174 = sbr.rel (%p172) target = $region20
        $region19: #{conformer_self_attention.4} parent=15 // pred_region
          %s175 = sand.u32 %s33, 1
          %s176 = scalar_lea.sflag [#allocation3], %s175
          %s177 = sand.u32 %s33, 1
          %s178 = smul.addr %s177, 8
          %s179 = scalar_lea.vmem [#allocation2], %s178
          %s181 = ssub.s32 128, 128
          %182 = vsyncadd %s176, %s181
          %s183 = smul.addr %s23, 128
          %s184 = scalar_lea.hbm %s0, %s183
          %s186 = sshll.u32 %s179, 4
          %s187 = int_to_ptr.vmem [resolvable:$true] %s186
          %189 = dma.hbm_to_vmem [thread:$0]  %s184, 128, %s187, %s176
        $region20: #{conformer_self_attention.4} parent=15 // pred_fallthru
          _
        // Predicated region
        $region21: #{conformer_self_attention.4} parent=15 // pred_check
          %p190 = pneg %p69
        $region22: #{conformer_self_attention.4} parent=15 // pred_check_branch
          %192 = sbr.rel (%p190) target = $region24
        $region23: #{conformer_self_attention.4} parent=15 // pred_region
          %s193 = sand.u32 %s23, 1
          %s194 = scalar_lea.sflag [#allocation6], %s193
          %s195 = sand.u32 %s59, 1
          %s196 = smul.addr %s195, 8
          %s197 = scalar_lea.vmem [#allocation5], %s196
          %s199 = ssub.s32 128, 128
          %200 = vsyncadd %s194, %s199
          %s201 = smul.addr %s23, 128
          %s202 = scalar_lea.hbm %s1, %s201
          %s204 = sshll.u32 %s197, 4
          %s205 = int_to_ptr.vmem [resolvable:$true] %s204
          %207 = dma.hbm_to_vmem [thread:$0]  %s202, 128, %s205, %s194
        $region24: #{conformer_self_attention.4} parent=15 // pred_fallthru
          _
        // Predicated region
        $region25: #{conformer_self_attention.4} parent=15 // pred_check
          %p208 = pneg %p95
        $region26: #{conformer_self_attention.4} parent=15 // pred_check_branch
          %210 = sbr.rel (%p208) target = $region28
        $region27: #{conformer_self_attention.4} parent=15 // pred_region
          %s211 = sand.u32 %s23, 1
          %s212 = scalar_lea.sflag [#allocation6], %s211
          %s213 = sand.u32 %s85, 1
          %s214 = smul.addr %s213, 8
          %s215 = scalar_lea.vmem [#allocation7], %s214
          %s217 = ssub.s32 128, 128
          %218 = vsyncadd %s212, %s217
          %s219 = smul.addr %s23, 128
          %s220 = scalar_lea.hbm %s2, %s219
          %s222 = sshll.u32 %s215, 4
          %s223 = int_to_ptr.vmem [resolvable:$true] %s222
          %225 = dma.hbm_to_vmem [thread:$0]  %s220, 128, %s223, %s212
        $region28: #{conformer_self_attention.4} parent=15 // pred_fallthru
          _
      $region16: #{conformer_self_attention.4} parent=5 // pred_fallthru
        _
      %p226 = scmp.le.s32.totalorder 1, %s23
      %p227 = scmp.lt.s32.totalorder %s23, 9
      %p228 = pnand %p226, %p227
      %p229 = pneg %p228
      // Predicated region
      $region29: #{conformer_self_attention.4} parent=5 // pred_check
        _
      $region30: #{conformer_self_attention.4} parent=5 // pred_check_branch
        %231 = sbr.rel (%p228) target = $region32
      $region31: #{conformer_self_attention.4} parent=5 // pred_region
        %s232 = ssub.s32 %s23, 1
        %s233 = sand.u32 %s36, 1
        %s234 = scalar_lea.sflag [#allocation3], %s233
        %s235 = sand.u32 %s36, 1
        %s236 = smul.addr %s235, 8
        %s237 = scalar_lea.vmem [#allocation2], %s236
        // Predicated region
        $region33: #{conformer_self_attention.4} parent=31 // pred_check
          %p238 = pneg %p49
        $region34: #{conformer_self_attention.4} parent=31 // pred_check_branch
          %240 = sbr.rel (%p238) target = $region36
        $region35: #{conformer_self_attention.4} parent=31 // pred_region
          %241 = dma.done %s234, 128
        $region36: #{conformer_self_attention.4} parent=31 // pred_fallthru
          _
        %s242 = sand.u32 %s28, 1
        %s243 = scalar_lea.sflag [#allocation6], %s242
        %s244 = sand.u32 %s62, 1
        %s245 = smul.addr %s244, 8
        %s246 = scalar_lea.vmem [#allocation5], %s245
        // Predicated region
        $region37: #{conformer_self_attention.4} parent=31 // pred_check
          %p247 = pneg %p75
        $region38: #{conformer_self_attention.4} parent=31 // pred_check_branch
          %249 = sbr.rel (%p247) target = $region40
        $region39: #{conformer_self_attention.4} parent=31 // pred_region
          %250 = dma.done %s243, 128
        $region40: #{conformer_self_attention.4} parent=31 // pred_fallthru
          _
        %s251 = sand.u32 %s28, 1
        %s252 = scalar_lea.sflag [#allocation6], %s251
        %s253 = sand.u32 %s88, 1
        %s254 = smul.addr %s253, 8
        %s255 = scalar_lea.vmem [#allocation7], %s254
        // Predicated region
        $region41: #{conformer_self_attention.4} parent=31 // pred_check
          %p256 = pneg %p101
        $region42: #{conformer_self_attention.4} parent=31 // pred_check_branch
          %258 = sbr.rel (%p256) target = $region44
        $region43: #{conformer_self_attention.4} parent=31 // pred_region
          %259 = dma.done %s252, 128
        $region44: #{conformer_self_attention.4} parent=31 // pred_fallthru
          _
        %s260 = sand.u32 %s36, 1
        %s261 = scalar_lea.sflag [#allocation3], %s260
        %s262 = sand.u32 %s36, 1
        %s263 = smul.addr %s262, 8
        %s264 = scalar_lea.vmem [#allocation2], %s263
        %p265 = pneg %p49
        %p266 = pneg %p46
        %s267 = sand.u32 %s28, 1
        %s268 = scalar_lea.sflag [#allocation6], %s267
        %s269 = sand.u32 %s62, 1
        %s270 = smul.addr %s269, 8
        %s271 = scalar_lea.vmem [#allocation5], %s270
        %p272 = pneg %p75
        %p273 = pneg %p72
        %s274 = sand.u32 %s28, 1
        %s275 = scalar_lea.sflag [#allocation6], %s274
        %s276 = sand.u32 %s88, 1
        %s277 = smul.addr %s276, 8
        %s278 = scalar_lea.vmem [#allocation7], %s277
        %p279 = pneg %p101
        %p280 = pneg %p98
        %p281 = pneg %p127
        %p282 = pneg %p124
        %s283 = sand.u32 %s114, 1
        %s284 = scalar_lea.sflag [#allocation4], %s283
        %s285 = sand.u32 %s114, 1
        %s286 = smul.addr %s285, 8
        %s287 = scalar_lea.vmem [#allocation8], %s286
        %p288 = pneg %p153
        %p289 = pneg %p150
        %s290 = sand.u32 %s140, 1
        %s291 = scalar_lea.sflag [#allocation10], %s290
        %s292 = sand.u32 %s140, 1
        %s293 = smul.addr %s292, 8
        %s294 = scalar_lea.vmem [#allocation9], %s293
        %v295 = vld [vmem:[%s237] sm:$0xff]
        %v296 = vld [vmem:[%s246] sm:$0xff]
        %v297 = vld [vmem:[%s255] sm:$0xff]
        %vm298 = vcmask 64512
        %v300 = vsel %vm298, %v295, 0
        %v303 = vsel %vm298, %v296, 0
        %305 = vmatprep.subr.mxu0 0.0
        %306 = vmatpush1.xpose.msra.mxu0 %v303
        %307 = vmatprep.subr.mxu0 0.0
        %308 = vmatpush1.xpose.msra.mxu0 0.0
        %309 = vmatprep.subr.mxu0 0.0
        %310 = vmatpush1.xpose.msra.mxu0 0.0
        %311 = vmatprep.subr.mxu0 0.0
        %312 = vmatpush1.xpose.msra.mxu0 0.0
        %313 = vmatprep.subr.mxu0 0.0
        %314 = vmatpush1.xpose.msra.mxu0 0.0
        %315 = vmatprep.subr.mxu0 0.0
        %316 = vmatpush1.xpose.msra.mxu0 0.0
        %317 = vmatprep.subr.mxu0 0.0
        %318 = vmatpush1.xpose.msra.mxu0 0.0
        %319 = vmatprep.subr.mxu0 0.0
        %320 = vmatpush1.xpose.msra.mxu0 0.0
        %321 = vmatprep.subr.mxu0 0.0
        %322 = vmatpush1.xpose.msra.mxu0 0.0
        %323 = vmatprep.subr.mxu0 0.0
        %324 = vmatpush1.xpose.msra.mxu0 0.0
        %325 = vmatprep.subr.mxu0 0.0
        %326 = vmatpush1.xpose.msra.mxu0 0.0
        %327 = vmatprep.subr.mxu0 0.0
        %328 = vmatpush1.xpose.msra.mxu0 0.0
        %329 = vmatprep.subr.mxu0 0.0
        %330 = vmatpush1.xpose.msra.mxu0 0.0
        %331 = vmatprep.subr.mxu0 0.0
        %332 = vmatpush1.xpose.msra.mxu0 0.0
        %333 = vmatprep.subr.mxu0 0.0
        %334 = vmatpush1.xpose.msra.mxu0 0.0
        %335 = vmatprep.subr.mxu0 0.0
        %336 = vmatpush1.xpose.msra.mxu0 0.0
        %337 = vmatprep.subr.mxu0 0.0
        %338 = vmatpush1.xpose.msra.mxu0 0.0
        %339 = vmatprep.subr.mxu0 0.0
        %340 = vmatpush1.xpose.msra.mxu0 0.0
        %341 = vmatprep.subr.mxu0 0.0
        %342 = vmatpush1.xpose.msra.mxu0 0.0
        %343 = vmatprep.subr.mxu0 0.0
        %344 = vmatpush1.xpose.msra.mxu0 0.0
        %345 = vmatprep.subr.mxu0 0.0
        %346 = vmatpush1.xpose.msra.mxu0 0.0
        %347 = vmatprep.subr.mxu0 0.0
        %348 = vmatpush1.xpose.msra.mxu0 0.0
        %349 = vmatprep.subr.mxu0 0.0
        %350 = vmatpush1.xpose.msra.mxu0 0.0
        %351 = vmatprep.subr.mxu0 0.0
        %352 = vmatpush1.xpose.msra.mxu0 0.0
        %353 = vmatprep.subr.mxu0 0.0
        %354 = vmatpush1.xpose.msra.mxu0 0.0
        %355 = vmatprep.subr.mxu0 0.0
        %356 = vmatpush1.xpose.msra.mxu0 0.0
        %357 = vmatprep.subr.mxu0 0.0
        %358 = vmatpush1.xpose.msra.mxu0 0.0
        %359 = vmatprep.subr.mxu0 0.0
        %360 = vmatpush1.xpose.msra.mxu0 0.0
        %361 = vmatprep.subr.mxu0 0.0
        %362 = vmatpush1.xpose.msra.mxu0 0.0
        %363 = vmatprep.subr.mxu0 0.0
        %364 = vmatpush1.xpose.msra.mxu0 0.0
        %365 = vmatprep.subr.mxu0 0.0
        %366 = vmatpush1.xpose.msra.mxu0 0.0
        %367 = vmatprep.subr.mxu0 0.0
        %368 = vmatpush1.xpose.msra.mxu0 0.0
        %369 = vmatprep.mubr.f32.mxu0 0.0
        %370 = vmatmul.mubr.f32.gmra.mrb[0].mxu0 %v300
        %v371 = vpop.f32.mrb[0].mxu0
        %v372 = vadd.f32 0.0, %v371
        %v373 = vpop.f32.mrb[0].mxu0
        %374 = vdwg.mxu0
        %v375 = vmul.f32 %v372, 0.35355338
        %v376 = vsel %vm298, %v375, -inf
        %377 = vmax.xlane.f32.xlu0 %v376
        %v378 = vpop.xlane.xlu0 %377
        %v379 = vsub.f32 %v375, %v378
        %v380 = vmul.f32 %v379, 1.442695
        %v381 = vpow.pop %v380
        %v382 = vsel %vm298, %v381, 0.0
        %383 = vadd.xlane.f32.xlu0 %v382
        %v384 = vpop.xlane.xlu0 %383
        %v385 = vrcp.pop %v384
        %v386 = vmul.f32 %v381, %v385
        %v388 = vsel %vm298, %v386, 0
        %390 = vmatprep.subr.mxu0 0.0
        %391 = vmatpush1.msra.mxu0 %v297
        %392 = vmatprep.subr.mxu0 0.0
        %393 = vmatpush1.msra.mxu0 0.0
        %394 = vmatprep.subr.mxu0 0.0
        %395 = vmatpush1.msra.mxu0 0.0
        %396 = vmatprep.subr.mxu0 0.0
        %397 = vmatpush1.msra.mxu0 0.0
        %398 = vmatprep.subr.mxu0 0.0
        %399 = vmatpush1.msra.mxu0 0.0
        %400 = vmatprep.subr.mxu0 0.0
        %401 = vmatpush1.msra.mxu0 0.0
        %402 = vmatprep.subr.mxu0 0.0
        %403 = vmatpush1.msra.mxu0 0.0
        %404 = vmatprep.subr.mxu0 0.0
        %405 = vmatpush1.msra.mxu0 0.0
        %406 = vmatprep.subr.mxu0 0.0
        %407 = vmatpush1.msra.mxu0 0.0
        %408 = vmatprep.subr.mxu0 0.0
        %409 = vmatpush1.msra.mxu0 0.0
        %410 = vmatprep.subr.mxu0 0.0
        %411 = vmatpush1.msra.mxu0 0.0
        %412 = vmatprep.subr.mxu0 0.0
        %413 = vmatpush1.msra.mxu0 0.0
        %414 = vmatprep.subr.mxu0 0.0
        %415 = vmatpush1.msra.mxu0 0.0
        %416 = vmatprep.subr.mxu0 0.0
        %417 = vmatpush1.msra.mxu0 0.0
        %418 = vmatprep.subr.mxu0 0.0
        %419 = vmatpush1.msra.mxu0 0.0
        %420 = vmatprep.subr.mxu0 0.0
        %421 = vmatpush1.msra.mxu0 0.0
        %422 = vmatprep.subr.mxu0 0.0
        %423 = vmatpush1.msra.mxu0 0.0
        %424 = vmatprep.subr.mxu0 0.0
        %425 = vmatpush1.msra.mxu0 0.0
        %426 = vmatprep.subr.mxu0 0.0
        %427 = vmatpush1.msra.mxu0 0.0
        %428 = vmatprep.subr.mxu0 0.0
        %429 = vmatpush1.msra.mxu0 0.0
        %430 = vmatprep.subr.mxu0 0.0
        %431 = vmatpush1.msra.mxu0 0.0
        %432 = vmatprep.subr.mxu0 0.0
        %433 = vmatpush1.msra.mxu0 0.0
        %434 = vmatprep.subr.mxu0 0.0
        %435 = vmatpush1.msra.mxu0 0.0
        %436 = vmatprep.subr.mxu0 0.0
        %437 = vmatpush1.msra.mxu0 0.0
        %438 = vmatprep.subr.mxu0 0.0
        %439 = vmatpush1.msra.mxu0 0.0
        %440 = vmatprep.subr.mxu0 0.0
        %441 = vmatpush1.msra.mxu0 0.0
        %442 = vmatprep.subr.mxu0 0.0
        %443 = vmatpush1.msra.mxu0 0.0
        %444 = vmatprep.subr.mxu0 0.0
        %445 = vmatpush1.msra.mxu0 0.0
        %446 = vmatprep.subr.mxu0 0.0
        %447 = vmatpush1.msra.mxu0 0.0
        %448 = vmatprep.subr.mxu0 0.0
        %449 = vmatpush1.msra.mxu0 0.0
        %450 = vmatprep.subr.mxu0 0.0
        %451 = vmatpush1.msra.mxu0 0.0
        %452 = vmatprep.subr.mxu0 0.0
        %453 = vmatpush1.msra.mxu0 0.0
        %454 = vmatprep.mubr.f32.mxu0 0.0
        %455 = vmatmul.mubr.f32.gmra.mrb[0].mxu0 %v388
        %v456 = vpop.f32.mrb[0].mxu0
        %v457 = vadd.f32 0.0, %v456
        %v458 = vpop.f32.mrb[0].mxu0
        %459 = vdwg.mxu0
        %460 = vst.msk [vmem:[%s287] sm:$0xff] %vm298, %v457
        %461 = vst.msk [vmem:[%s294] sm:$0xff] %vm298, %v386
        %s462 = sand.u32 %s114, 1
        %s463 = scalar_lea.sflag [#allocation4], %s462
        %s464 = sand.u32 %s114, 1
        %s465 = smul.addr %s464, 8
        %s466 = scalar_lea.vmem [#allocation8], %s465
        %s467 = sand.u32 %s140, 1
        %s468 = scalar_lea.sflag [#allocation10], %s467
        %s469 = sand.u32 %s140, 1
        %s470 = smul.addr %s469, 8
        %s471 = scalar_lea.vmem [#allocation9], %s470
        // Predicated region
        $region45: #{conformer_self_attention.4} parent=31 // pred_check
          %p472 = pneg %p124
        $region46: #{conformer_self_attention.4} parent=31 // pred_check_branch
          %474 = sbr.rel (%p472) target = $region48
        $region47: #{conformer_self_attention.4} parent=31 // pred_region
          %s476 = ssub.s32 128, 128
          %477 = vsyncadd %s463, %s476
          %s478 = smul.addr %s28, 128
          %s479 = scalar_lea.hbm %s3, %s478
          %s481 = sshll.u32 %s466, 4
          %s482 = int_to_ptr.vmem [resolvable:$true] %s481
          %484 = dma.vmem_to_hbm [thread:$0]  %s482, 128, %s479, %s463
        $region48: #{conformer_self_attention.4} parent=31 // pred_fallthru
          _
        // Predicated region
        $region49: #{conformer_self_attention.4} parent=31 // pred_check
          %p485 = pneg %p150
        $region50: #{conformer_self_attention.4} parent=31 // pred_check_branch
          %487 = sbr.rel (%p485) target = $region52
        $region51: #{conformer_self_attention.4} parent=31 // pred_region
          %s489 = ssub.s32 128, 128
          %490 = vsyncadd %s468, %s489
          %s491 = smul.addr %s28, 128
          %s492 = scalar_lea.hbm %s4, %s491
          %s494 = sshll.u32 %s471, 4
          %s495 = int_to_ptr.vmem [resolvable:$true] %s494
          %497 = dma.vmem_to_hbm [thread:$0]  %s495, 128, %s492, %s468
        $region52: #{conformer_self_attention.4} parent=31 // pred_fallthru
          _
      $region32: #{conformer_self_attention.4} parent=5 // pred_fallthru
        _
      %p498 = scmp.le.s32.totalorder 2, %s23
      // Predicated region
      $region53: #{conformer_self_attention.4} parent=5 // pred_check
        %p499 = pneg %p498
      $region54: #{conformer_self_attention.4} parent=5 // pred_check_branch
        %501 = sbr.rel (%p499) target = $region56
      $region55: #{conformer_self_attention.4} parent=5 // pred_region
        %s502 = ssub.s32 %s23, 2
        // Predicated region
        $region57: #{conformer_self_attention.4} parent=55 // pred_check
          %p503 = pneg %p130
        $region58: #{conformer_self_attention.4} parent=55 // pred_check_branch
          %505 = sbr.rel (%p503) target = $region60
        $region59: #{conformer_self_attention.4} parent=55 // pred_region
          %s506 = sand.u32 %s115, 1
          %s507 = scalar_lea.sflag [#allocation4], %s506
          %s508 = sand.u32 %s115, 1
          %s509 = smul.addr %s508, 8
          %s510 = scalar_lea.vmem [#allocation8], %s509
          %511 = dma.done %s507, 128
        $region60: #{conformer_self_attention.4} parent=55 // pred_fallthru
          _
        // Predicated region
        $region61: #{conformer_self_attention.4} parent=55 // pred_check
          %p512 = pneg %p156
        $region62: #{conformer_self_attention.4} parent=55 // pred_check_branch
          %514 = sbr.rel (%p512) target = $region64
        $region63: #{conformer_self_attention.4} parent=55 // pred_region
          %s515 = sand.u32 %s141, 1
          %s516 = scalar_lea.sflag [#allocation10], %s515
          %s517 = sand.u32 %s141, 1
          %s518 = smul.addr %s517, 8
          %s519 = scalar_lea.vmem [#allocation9], %s518
          %520 = dma.done %s516, 128
        $region64: #{conformer_self_attention.4} parent=55 // pred_fallthru
          _
      $region56: #{conformer_self_attention.4} parent=5 // pred_fallthru
        _
    $region6: #{conformer_self_attention.4} parent=1 // loop_footer
      %s27 = sadd.s32 1, %s23
    $region7: #{conformer_self_attention.4} parent=1 // loop_footer_branch
      %22 = sbr.rel target = $region3
    $region8: #{conformer_self_attention.4} parent=1 // loop_exit
      _
    %521 = vsyncpa [#allocation3], 1
    %s522 = scalar_lea.sflag [#allocation3], 1
    %523 = vsyncpa %s522, 1
    %524 = vsyncpa [#allocation6], 1
    %s525 = scalar_lea.sflag [#allocation6], 1
    %526 = vsyncpa %s525, 1
    %527 = vsyncpa [#allocation4], 1
    %s528 = scalar_lea.sflag [#allocation4], 1
    %529 = vsyncpa %s528, 1
    %530 = vsyncpa [#allocation10], 1
    %s531 = scalar_lea.sflag [#allocation10], 1
    %532 = vsyncpa %s531, 1

</llo_original>
